<compile_context>
chip_gen: v7x
topology: tpu7x:2x2x1
jax: 0.10.0
libtpu: 0.0.40
codegen_flags: <defaults>
</compile_context>

<pallas_src>
import functools

import jax
import jax.numpy as jnp
from jax.experimental import pallas as pl
from jax.experimental.pallas import tpu as pltpu


def _round_up(v, m):
    return ((v + m - 1) // m) * m


def _residual_block_kernel(W, HW, PW, G, eps, use_per_tap, cdt,
                           x_ref, w1_ref, g1_ref, b1_ref,
                           w2_ref, g2_ref, b2_ref,
                           out_ref, pad_ref):
    Cpad = x_ref.shape[1]

    # Zero only the halo columns, once per grid step (the interior is fully
    # overwritten by each conv); shared by both convs and all G images.
    zeros_halo = jnp.zeros((Cpad, PW), cdt)
    pad_ref[:, pl.ds(0, PW)] = zeros_halo
    pad_ref[:, pl.ds(PW + HW, PW)] = zeros_halo

    # Horizontal wrap masks: integer work only at (1, HW), broadcast once and
    # reused by both convs and all G images (perf review: shrink/hoist masks).
    col = jax.lax.broadcasted_iota(jnp.int32, (1, HW), 1) % W
    m_left = jnp.broadcast_to((col >= 1).astype(jnp.float32),
                              (Cpad, HW)).astype(cdt)
    m_right = jnp.broadcast_to((col < W - 1).astype(jnp.float32),
                               (Cpad, HW)).astype(cdt)

    inv_hw = jnp.float32(1.0 / HW)

    def conv3x3(act_f32, w_ref):
        # Activation (cast to the bf16/f32 compute dtype) -> halo-padded
        # scratch.  PW % 128 == 0 so the interior store is lane-aligned, and
        # vertical out-of-image taps read halo zeros automatically.
        act = act_f32.astype(cdt)
        pad_ref[:, pl.ds(PW, HW)] = act

        def tap(t):
            kx, ky = divmod(t, 3)
            dy, dx = ky - 1, kx - 1
            if dy == 0 and dx == 0:
                p = act                                   # centre tap: no reload
            else:
                p = pad_ref[:, pl.ds(PW + dy * W + dx, HW)]
            if dx == -1:
                p = p * m_left
            elif dx == 1:
                p = p * m_right
            return p

        if use_per_tap:
            # Large C: nine accumulated (Cpad, Cpad) @ (Cpad, HW) MXU matmuls
            # in the compute dtype with f32 accumulation.  K = Cpad >= 128
            # keeps the MXU full and removes the 9x-activation im2col slab.
            acc = jnp.dot(w_ref[0], tap(0), preferred_element_type=jnp.float32)
            for t in range(1, 9):
                acc = acc + jnp.dot(w_ref[t], tap(t),
                                    preferred_element_type=jnp.float32)
            return acc
        # Small C: one fused (Cpad, 9*Cpad) @ (9*Cpad, HW) matmul so the MXU
        # weight tile is staged once per conv (K = 9*Cpad instead of Cpad).
        # Cpad is a multiple of the sublane packing, so the concat is aligned.
        slab = jnp.concatenate([tap(t) for t in range(9)], axis=0)
        return jnp.dot(w_ref[...], slab, preferred_element_type=jnp.float32)

    def instance_norm(act, g_ref, b_ref):
        # Sum and sum-of-squares straight from the raw activation (no centered
        # second pass), folded into one per-channel scale + shift.
        s1 = jnp.sum(act, axis=1, keepdims=True)
        s2 = jnp.sum(act * act, axis=1, keepdims=True)
        mean = s1 * inv_hw
        var = jnp.maximum(s2 * inv_hw - mean * mean, 0.0)   # biased variance
        scale = g_ref[...] * jax.lax.rsqrt(var + eps)
        shift = b_ref[...] - mean * scale
        return act * scale + shift

    for g in range(G):                       # static unroll: images in this block
        x = x_ref[g]                         # (Cpad, HW) f32
        h = conv3x3(x, w1_ref)
        h = instance_norm(h, g1_ref, b1_ref)
        h = jnp.maximum(h, 0.0)              # ReLU
        h = conv3x3(h, w2_ref)
        h = instance_norm(h, g2_ref, b2_ref)
        out_ref[g] = x + h                   # residual (f32)


def _pick_images_per_step(B, Cpad, HW):
    """Small-C regime: batch several images per grid step to amortize per-step
    overhead and mask/halo setup, while keeping >= 2 grid steps (v7x has two
    TensorCores) and a modest per-step activation footprint."""
    if Cpad >= 64:
        return 1
    per_img = 4 * Cpad * _round_up(HW, 128) * 4      # in+out, double-buffered, f32
    cap = max(1, min(8, (8 * 1024 * 1024) // max(per_img, 1)))
    best = 1
    for g in range(1, B + 1):
        if B % g == 0 and g <= cap and B // g >= min(B, 2):
            best = g
    return best


def residual_block(x_nchw, params, *, eps=1e-5, use_bf16=True):
    """params = (w1, g1, b1, w2, g2, b2); conv weights in PyTorch OIHW layout.

    use_bf16=True runs both 3x3 convs on the MXU in bfloat16 (f32 accumulation;
    instance norm / residual stay f32).  use_bf16=False keeps everything f32.
    """
    w1, g1, b1, w2, g2, b2 = params
    B, C, H, W = x_nchw.shape
    assert w1.shape == (C, C, 3, 3) and w2.shape == (C, C, 3, 3), \
        "residual add requires dim_in == dim_out"
    HW = H * W
    cdt = jnp.bfloat16 if use_bf16 else jnp.float32
    cb = 2 if use_bf16 else 4
    # Channels padded to the compute dtype's sublane packing so the im2col
    # concat in the small-C path is tile-aligned.
    Cpad = _round_up(C, 16 if use_bf16 else 8)
    PW = _round_up(W + 1, 128)               # halo width, lane-tile aligned
    lane = lambda n: _round_up(n, 128)

    # Per-tap accumulation for large C or when the fused slab would be huge.
    use_per_tap = (Cpad >= 128) or (9 * Cpad * lane(HW) * cb > 8 * 1024 * 1024)
    G = _pick_images_per_step(B, Cpad, HW)

    # NCHW -> (B, Cpad, HW): free reshape, channels zero-padded to Cpad.
    x = x_nchw.reshape(B, C, HW).astype(jnp.float32)
    if Cpad != C:
        x = jnp.pad(x, ((0, 0), (0, Cpad - C), (0, 0)))

    def prep_w(w):
        # OIHW -> im2col weight layout matching the kernel's tap order
        # t = kx*3 + ky; cast to the compute dtype (bf16 MXU path); padded
        # rows/cols are zero so padded channels stay exactly zero.
        wp = jnp.zeros((Cpad, Cpad, 3, 3), jnp.float32)
        wp = wp.at[:C, :C].set(w.astype(jnp.float32))
        if use_per_tap:
            m = jnp.transpose(wp, (3, 2, 0, 1)).reshape(9, Cpad, Cpad)
        else:
            m = jnp.transpose(wp, (0, 3, 2, 1)).reshape(Cpad, 9 * Cpad)
        return m.astype(cdt)

    def prep_affine(v):
        return jnp.pad(v.astype(jnp.float32), (0, Cpad - C)).reshape(Cpad, 1)

    w1m, w2m = prep_w(w1), prep_w(w2)
    g1m, b1m, g2m, b2m = (prep_affine(v) for v in (g1, b1, g2, b2))

    # Whole-image blocks (instance norm needs full-image statistics): budget
    # VMEM explicitly, with the cap taken from the actual part (v5e/v6e:
    # 128 MiB, v7x: 64 MiB) so big images on big-VMEM parts are not rejected.
    act_f32 = Cpad * lane(HW) * 4
    pad_bytes = Cpad * lane(2 * PW + HW) * cb
    if use_per_tap:
        w_bytes = 9 * Cpad * lane(Cpad) * cb
        slab_bytes = 0
    else:
        w_bytes = Cpad * lane(9 * Cpad) * cb
        slab_bytes = 2 * 9 * Cpad * lane(HW) * cb          # pieces + concat at peak
    vmem_est = (4 * G * act_f32                            # x + out, double-buffered
                + 2 * 2 * w_bytes                          # both conv weights
                + 4 * 2 * Cpad * 128 * 4                   # gammas / betas
                + pad_bytes + slab_bytes
                + 6 * act_f32 + 2 * Cpad * lane(HW) * cb)  # live h/acc/mask headroom
    try:
        vmem_cap = int(pltpu.get_tpu_info().vmem_capacity_bytes)
    except Exception:
        vmem_cap = 64 * 1024 * 1024                        # conservative: v7x
    budget = (vmem_cap * 3) // 4                           # headroom for Mosaic scratch
    assert vmem_est <= budget, (
        f"image too large for whole-image blocks on this part "
        f"(need ~{vmem_est >> 20} MiB, budget {budget >> 20} MiB); needs an "
        f"H-tiled two-pass instance-norm variant")
    # TODO(synk): H-tiled two-pass instance-norm variant for very large images
    # (also gives >B grid steps for better v7x dual-core balance at small/odd B).
    # TODO(synk): pipeline_mode=pl.Buffered(1) on the constant-index weight /
    # affine specs would save their second pipeline buffer (v7x VMEM headroom).
    vmem_limit = int(min(max(2 * vmem_est, 32 * 1024 * 1024), budget))

    if use_per_tap:
        w_spec = pl.BlockSpec((9, Cpad, Cpad), lambda b: (0, 0, 0))
    else:
        w_spec = pl.BlockSpec((Cpad, 9 * Cpad), lambda b: (0, 0))
    aff_spec = pl.BlockSpec((Cpad, 1), lambda b: (0, 0))
    act_spec = pl.BlockSpec((G, Cpad, HW), lambda b: (b, 0, 0))

    kernel = functools.partial(_residual_block_kernel,
                               W, HW, PW, G, eps, use_per_tap, cdt)
    out = pl.pallas_call(
        kernel,
        out_shape=jax.ShapeDtypeStruct((B, Cpad, HW), jnp.float32),
        grid_spec=pltpu.PrefetchScalarGridSpec(
            num_scalar_prefetch=0,
            grid=(B // G,),
            in_specs=[act_spec,                 # x
                      w_spec, aff_spec, aff_spec,   # conv1 w, gamma1, beta1
                      w_spec, aff_spec, aff_spec],  # conv2 w, gamma2, beta2
            out_specs=act_spec,
            scratch_shapes=[pltpu.VMEM((Cpad, 2 * PW + HW), cdt)],
        ),
        compiler_params=pltpu.CompilerParams(
            dimension_semantics=("parallel",),
            vmem_limit_bytes=vmem_limit),
    )(x, w1m, g1m, b1m, w2m, g2m, b2m)

    # (B, Cpad, HW) -> NCHW, dropping padded channels.
    return out[:, :C, :].reshape(B, C, H, W)


def residual_block_ref(x, params, eps=1e-5):
    """Pure-JAX reference (mirrors the PyTorch forward) for verification."""
    w1, g1, b1, w2, g2, b2 = params

    def conv(a, w):
        return jax.lax.conv_general_dilated(
            a, w, window_strides=(1, 1), padding=((1, 1), (1, 1)),
            dimension_numbers=('NCHW', 'OIHW', 'NCHW'),
            precision=jax.lax.Precision.HIGHEST)

    def inorm(a, g, b):
        mean = a.mean(axis=(2, 3), keepdims=True)
        var = ((a - mean) ** 2).mean(axis=(2, 3), keepdims=True)
        return ((a - mean) * jax.lax.rsqrt(var + eps)
                * g[None, :, None, None] + b[None, :, None, None])

    h = conv(x, w1)
    h = inorm(h, g1, b1)
    h = jnp.maximum(h, 0.0)
    h = conv(h, w2)
    h = inorm(h, g2, b2)
    return x + h


def _make_inputs(key, B, C, H, W):
    kx, k1, k2, k3, k4, k5, k6 = jax.random.split(key, 7)
    x = jax.random.normal(kx, (B, C, H, W), jnp.float32)
    w1 = 0.1 * jax.random.normal(k1, (C, C, 3, 3), jnp.float32)
    w2 = 0.1 * jax.random.normal(k2, (C, C, 3, 3), jnp.float32)
    g1 = 1.0 + 0.1 * jax.random.normal(k3, (C,), jnp.float32)
    b1 = 0.1 * jax.random.normal(k4, (C,), jnp.float32)
    g2 = 1.0 + 0.1 * jax.random.normal(k5, (C,), jnp.float32)
    b2 = 0.1 * jax.random.normal(k6, (C,), jnp.float32)
    return x, (w1, g1, b1, w2, g2, b2)


if __name__ == "__main__":
    key = jax.random.PRNGKey(0)
    # (B, C, H, W, use_bf16, tol)         exercised kernel path
    cases = [
        (2, 4, 16, 16, False, 5e-4),      # fused im2col, f32 precision, 1 img/step
        (4, 4, 12, 10, True, 2.5e-2),     # fused im2col, bf16 MXU, 2 imgs/step
        (2, 128, 8, 8, True, 2.5e-2),     # per-tap accumulation, bf16 MXU
    ]
    for i, (B, C, H, W, use_bf16, tol) in enumerate(cases):
        key, sub = jax.random.split(key)
        x, params = _make_inputs(sub, B, C, H, W)
        out = jax.block_until_ready(residual_block(x, params, use_bf16=use_bf16))
        ref = residual_block_ref(x, params)
        assert out.shape == x.shape
        err = float(jnp.max(jnp.abs(out - ref)))
        # bf16 MXU rounding (two convs, re-normalized) needs the looser bound.
        assert bool(jnp.allclose(out, ref, atol=tol, rtol=tol)), (i, err)
    print("KERNEL_OK")
</pallas_src>

<mosaic_0001>
module attributes {stable_mosaic.version = 11 : i64} {
  func.func @_residual_block_kernel(%arg0: i32, %arg1: memref<1x8x256xf32, #tpu.memory_space<vmem>>, %arg2: memref<8x72xf32, #tpu.memory_space<vmem>>, %arg3: memref<8x1xf32, #tpu.memory_space<vmem>>, %arg4: memref<8x1xf32, #tpu.memory_space<vmem>>, %arg5: memref<8x72xf32, #tpu.memory_space<vmem>>, %arg6: memref<8x1xf32, #tpu.memory_space<vmem>>, %arg7: memref<8x1xf32, #tpu.memory_space<vmem>>, %arg8: memref<1x8x256xf32, #tpu.memory_space<vmem>>, %arg9: memref<8x512xf32, #tpu.memory_space<vmem>>) attributes {dimension_semantics = [#tpu.dimension_semantics<parallel>], iteration_bounds = array<i64: 2>, scalar_prefetch = 0 : i64, scratch_operands = 1 : i64, tpu.core_type = #tpu.core_type<tc>, window_params = [{transform_indices = @transform_0, window_bounds = array<i64: 1, 8, 256>}, {pipeline_mode = #tpu.pipeline_mode<synchronous>, transform_indices = @transform_1, window_bounds = array<i64: 8, 72>}, {pipeline_mode = #tpu.pipeline_mode<synchronous>, transform_indices = @transform_2, window_bounds = array<i64: 8, 1>}, {pipeline_mode = #tpu.pipeline_mode<synchronous>, transform_indices = @transform_3, window_bounds = array<i64: 8, 1>}, {pipeline_mode = #tpu.pipeline_mode<synchronous>, transform_indices = @transform_4, window_bounds = array<i64: 8, 72>}, {pipeline_mode = #tpu.pipeline_mode<synchronous>, transform_indices = @transform_5, window_bounds = array<i64: 8, 1>}, {pipeline_mode = #tpu.pipeline_mode<synchronous>, transform_indices = @transform_6, window_bounds = array<i64: 8, 1>}, {transform_indices = @transform_7, window_bounds = array<i64: 1, 8, 256>}]} {
    %cst = arith.constant 0.000000e+00 : f32
    %0 = vector.broadcast %cst : f32 to vector<8x128xf32>
    %c0 = arith.constant 0 : index
    %c0_0 = arith.constant 0 : index
    %1 = vector.load %arg9[%c0, %c0_0] : memref<8x512xf32, #tpu.memory_space<vmem>>, vector<8x128xf32>
    tpu.vector_store %arg9[%c0, %c0_0], %0 {strides = array<i32>} : memref<8x512xf32, #tpu.memory_space<vmem>>, vector<8x128xf32>,
    %c0_1 = arith.constant 0 : index
    %c384 = arith.constant 384 : index
    %2 = vector.load %arg9[%c0_1, %c384] : memref<8x512xf32, #tpu.memory_space<vmem>>, vector<8x128xf32>
    tpu.vector_store %arg9[%c0_1, %c384], %0 {strides = array<i32>} : memref<8x512xf32, #tpu.memory_space<vmem>>, vector<8x128xf32>,
    %3 = tpu.iota {dimensions = array<i32: 1>} : vector<1x256xi32>
    %c16_i32 = arith.constant 16 : i32
    %c0_i32 = arith.constant 0 : i32
    %4 = arith.cmpi eq, %c16_i32, %c0_i32 : i32
    %c1_i32 = arith.constant 1 : i32
    %5 = arith.select %4, %c1_i32, %c16_i32 : i32
    %6 = vector.broadcast %5 : i32 to vector<1x256xi32>
    %7 = arith.remsi %3, %6 : vector<1x256xi32>
    %c0_i32_2 = arith.constant 0 : i32
    %8 = vector.broadcast %c0_i32_2 : i32 to vector<1x256xi32>
    %9 = arith.cmpi ne, %7, %8 : vector<1x256xi32>
    %c0_i32_3 = arith.constant 0 : i32
    %10 = vector.broadcast %c0_i32_3 : i32 to vector<1x256xi32>
    %11 = arith.cmpi slt, %7, %10 : vector<1x256xi32>
    %c0_i32_4 = arith.constant 0 : i32
    %12 = arith.cmpi slt, %5, %c0_i32_4 : i32
    %13 = vector.broadcast %12 : i1 to vector<1x256xi1>
    %14 = vector.broadcast %13 : vector<1x256xi1> to vector<1x256xi1>
    %15 = arith.xori %11, %14 : vector<1x256xi1>
    %16 = arith.andi %15, %9 : vector<1x256xi1>
    %17 = vector.broadcast %5 : i32 to vector<1x256xi32>
    %18 = arith.addi %7, %17 : vector<1x256xi32>
    %19 = arith.select %16, %18, %7 : vector<1x256xi1>, vector<1x256xi32>
    %c1_i32_5 = arith.constant 1 : i32
    %20 = vector.broadcast %c1_i32_5 : i32 to vector<1x256xi32>
    %21 = arith.cmpi sge, %19, %20 : vector<1x256xi32>
    %22 = arith.extui %21 : vector<1x256xi1> to vector<1x256xi32>
    %23 = arith.sitofp %22 : vector<1x256xi32> to vector<1x256xf32>
    %24 = vector.shape_cast %23 : vector<1x256xf32> to vector<1x256xf32>
    %25 = vector.broadcast %24 : vector<1x256xf32> to vector<8x256xf32>
    %c15_i32 = arith.constant 15 : i32
    %26 = vector.broadcast %c15_i32 : i32 to vector<1x256xi32>
    %27 = arith.cmpi slt, %19, %26 : vector<1x256xi32>
    %28 = arith.extui %27 : vector<1x256xi1> to vector<1x256xi32>
    %29 = arith.sitofp %28 : vector<1x256xi32> to vector<1x256xf32>
    %30 = vector.shape_cast %29 : vector<1x256xf32> to vector<1x256xf32>
    %31 = vector.broadcast %30 : vector<1x256xf32> to vector<8x256xf32>
    %c0_6 = arith.constant 0 : index
    %c0_7 = arith.constant 0 : index
    %c0_8 = arith.constant 0 : index
    %32 = vector.load %arg1[%c0_6, %c0_7, %c0_8] : memref<1x8x256xf32, #tpu.memory_space<vmem>>, vector<1x8x256xf32>
    %33 = vector.shape_cast %32 : vector<1x8x256xf32> to vector<8x256xf32>
    %c0_9 = arith.constant 0 : index
    %c128 = arith.constant 128 : index
    %34 = vector.load %arg9[%c0_9, %c128] : memref<8x512xf32, #tpu.memory_space<vmem>>, vector<8x256xf32>
    tpu.vector_store %arg9[%c0_9, %c128], %33 {strides = array<i32>} : memref<8x512xf32, #tpu.memory_space<vmem>>, vector<8x256xf32>,
    %c0_10 = arith.constant 0 : index
    %c111 = arith.constant 111 : index
    %35 = vector.load %arg9[%c0_10, %c111] : memref<8x512xf32, #tpu.memory_space<vmem>>, vector<8x256xf32>
    %36 = arith.mulf %35, %25 : vector<8x256xf32>
    %c0_11 = arith.constant 0 : index
    %c127 = arith.constant 127 : index
    %37 = vector.load %arg9[%c0_11, %c127] : memref<8x512xf32, #tpu.memory_space<vmem>>, vector<8x256xf32>
    %38 = arith.mulf %37, %25 : vector<8x256xf32>
    %c0_12 = arith.constant 0 : index
    %c143 = arith.constant 143 : index
    %39 = vector.load %arg9[%c0_12, %c143] : memref<8x512xf32, #tpu.memory_space<vmem>>, vector<8x256xf32>
    %40 = arith.mulf %39, %25 : vector<8x256xf32>
    %c0_13 = arith.constant 0 : index
    %c112 = arith.constant 112 : index
    %41 = vector.load %arg9[%c0_13, %c112] : memref<8x512xf32, #tpu.memory_space<vmem>>, vector<8x256xf32>
    %c0_14 = arith.constant 0 : index
    %c144 = arith.constant 144 : index
    %42 = vector.load %arg9[%c0_14, %c144] : memref<8x512xf32, #tpu.memory_space<vmem>>, vector<8x256xf32>
    %c0_15 = arith.constant 0 : index
    %c113 = arith.constant 113 : index
    %43 = vector.load %arg9[%c0_15, %c113] : memref<8x512xf32, #tpu.memory_space<vmem>>, vector<8x256xf32>
    %44 = arith.mulf %43, %31 : vector<8x256xf32>
    %c0_16 = arith.constant 0 : index
    %c129 = arith.constant 129 : index
    %45 = vector.load %arg9[%c0_16, %c129] : memref<8x512xf32, #tpu.memory_space<vmem>>, vector<8x256xf32>
    %46 = arith.mulf %45, %31 : vector<8x256xf32>
    %c0_17 = arith.constant 0 : index
    %c145 = arith.constant 145 : index
    %47 = vector.load %arg9[%c0_17, %c145] : memref<8x512xf32, #tpu.memory_space<vmem>>, vector<8x256xf32>
    %48 = arith.mulf %47, %31 : vector<8x256xf32>
    %49 = tpu.concatenate %36, %38, %40, %41, %33, %42, %44, %46, %48 in 0 : vector<8x256xf32>, vector<8x256xf32>, vector<8x256xf32>, vector<8x256xf32>, vector<8x256xf32>, vector<8x256xf32>, vector<8x256xf32>, vector<8x256xf32>, vector<8x256xf32> -> vector<72x256xf32>
    %c0_18 = arith.constant 0 : index
    %c0_19 = arith.constant 0 : index
    %50 = vector.load %arg2[%c0_18, %c0_19] : memref<8x72xf32, #tpu.memory_space<vmem>>, vector<8x72xf32>
    %cst_20 = arith.constant dense<0.000000e+00> : vector<8x256xf32>
    %51 = tpu.matmul %50, %49, %cst_20 {dimension_numbers = #tpu.dot_dimension_numbers<[1], [0], [0], [1], [0, 0, 1, 1], [], []>} : vector<8x72xf32>, vector<72x256xf32>, vector<8x256xf32> -> vector<8x256xf32>
    %cst_21 = arith.constant dense<0.000000e+00> : vector<8xf32>
    %52 = vector.multi_reduction <add>, %51, %cst_21 [1] : vector<8x256xf32> to vector<8xf32>
    %53 = vector.shape_cast %52 : vector<8xf32> to vector<8x1xf32>
    %54 = arith.mulf %51, %51 : vector<8x256xf32>
    %cst_22 = arith.constant dense<0.000000e+00> : vector<8xf32>
    %55 = vector.multi_reduction <add>, %54, %cst_22 [1] : vector<8x256xf32> to vector<8xf32>
    %56 = vector.shape_cast %55 : vector<8xf32> to vector<8x1xf32>
    %cst_23 = arith.constant 3.906250e-03 : f32
    %57 = vector.broadcast %cst_23 : f32 to vector<8x1xf32>
    %58 = arith.mulf %53, %57 : vector<8x1xf32>
    %cst_24 = arith.constant 3.906250e-03 : f32
    %59 = vector.broadcast %cst_24 : f32 to vector<8x1xf32>
    %60 = arith.mulf %56, %59 : vector<8x1xf32>
    %61 = arith.mulf %58, %58 : vector<8x1xf32>
    %62 = arith.subf %60, %61 : vector<8x1xf32>
    %cst_25 = arith.constant 0.000000e+00 : f32
    %63 = vector.broadcast %cst_25 : f32 to vector<8x1xf32>
    %64 = arith.maximumf %62, %63 : vector<8x1xf32>
    %c0_26 = arith.constant 0 : index
    %c0_27 = arith.constant 0 : index
    %65 = vector.load %arg3[%c0_26, %c0_27] : memref<8x1xf32, #tpu.memory_space<vmem>>, vector<8x1xf32>
    %cst_28 = arith.constant 9.99999974E-6 : f32
    %66 = vector.broadcast %cst_28 : f32 to vector<8x1xf32>
    %67 = arith.addf %64, %66 : vector<8x1xf32>
    %68 = math.rsqrt %67 : vector<8x1xf32>
    %69 = arith.mulf %65, %68 : vector<8x1xf32>
    %c0_29 = arith.constant 0 : index
    %c0_30 = arith.constant 0 : index
    %70 = vector.load %arg4[%c0_29, %c0_30] : memref<8x1xf32, #tpu.memory_space<vmem>>, vector<8x1xf32>
    %71 = arith.mulf %58, %69 : vector<8x1xf32>
    %72 = arith.subf %70, %71 : vector<8x1xf32>
    %73 = vector.broadcast %69 : vector<8x1xf32> to vector<8x256xf32>
    %74 = arith.mulf %51, %73 : vector<8x256xf32>
    %75 = vector.broadcast %72 : vector<8x1xf32> to vector<8x256xf32>
    %76 = arith.addf %74, %75 : vector<8x256xf32>
    %cst_31 = arith.constant 0.000000e+00 : f32
    %77 = vector.broadcast %cst_31 : f32 to vector<8x256xf32>
    %78 = arith.maximumf %76, %77 : vector<8x256xf32>
    %c0_32 = arith.constant 0 : index
    %c128_33 = arith.constant 128 : index
    %79 = vector.load %arg9[%c0_32, %c128_33] : memref<8x512xf32, #tpu.memory_space<vmem>>, vector<8x256xf32>
    tpu.vector_store %arg9[%c0_32, %c128_33], %78 {strides = array<i32>} : memref<8x512xf32, #tpu.memory_space<vmem>>, vector<8x256xf32>,
    %c0_34 = arith.constant 0 : index
    %c111_35 = arith.constant 111 : index
    %80 = vector.load %arg9[%c0_34, %c111_35] : memref<8x512xf32, #tpu.memory_space<vmem>>, vector<8x256xf32>
    %81 = arith.mulf %80, %25 : vector<8x256xf32>
    %c0_36 = arith.constant 0 : index
    %c127_37 = arith.constant 127 : index
    %82 = vector.load %arg9[%c0_36, %c127_37] : memref<8x512xf32, #tpu.memory_space<vmem>>, vector<8x256xf32>
    %83 = arith.mulf %82, %25 : vector<8x256xf32>
    %c0_38 = arith.constant 0 : index
    %c143_39 = arith.constant 143 : index
    %84 = vector.load %arg9[%c0_38, %c143_39] : memref<8x512xf32, #tpu.memory_space<vmem>>, vector<8x256xf32>
    %85 = arith.mulf %84, %25 : vector<8x256xf32>
    %c0_40 = arith.constant 0 : index
    %c112_41 = arith.constant 112 : index
    %86 = vector.load %arg9[%c0_40, %c112_41] : memref<8x512xf32, #tpu.memory_space<vmem>>, vector<8x256xf32>
    %c0_42 = arith.constant 0 : index
    %c144_43 = arith.constant 144 : index
    %87 = vector.load %arg9[%c0_42, %c144_43] : memref<8x512xf32, #tpu.memory_space<vmem>>, vector<8x256xf32>
    %c0_44 = arith.constant 0 : index
    %c113_45 = arith.constant 113 : index
    %88 = vector.load %arg9[%c0_44, %c113_45] : memref<8x512xf32, #tpu.memory_space<vmem>>, vector<8x256xf32>
    %89 = arith.mulf %88, %31 : vector<8x256xf32>
    %c0_46 = arith.constant 0 : index
    %c129_47 = arith.constant 129 : index
    %90 = vector.load %arg9[%c0_46, %c129_47] : memref<8x512xf32, #tpu.memory_space<vmem>>, vector<8x256xf32>
    %91 = arith.mulf %90, %31 : vector<8x256xf32>
    %c0_48 = arith.constant 0 : index
    %c145_49 = arith.constant 145 : index
    %92 = vector.load %arg9[%c0_48, %c145_49] : memref<8x512xf32, #tpu.memory_space<vmem>>, vector<8x256xf32>
    %93 = arith.mulf %92, %31 : vector<8x256xf32>
    %94 = tpu.concatenate %81, %83, %85, %86, %78, %87, %89, %91, %93 in 0 : vector<8x256xf32>, vector<8x256xf32>, vector<8x256xf32>, vector<8x256xf32>, vector<8x256xf32>, vector<8x256xf32>, vector<8x256xf32>, vector<8x256xf32>, vector<8x256xf32> -> vector<72x256xf32>
    %c0_50 = arith.constant 0 : index
    %c0_51 = arith.constant 0 : index
    %95 = vector.load %arg5[%c0_50, %c0_51] : memref<8x72xf32, #tpu.memory_space<vmem>>, vector<8x72xf32>
    %cst_52 = arith.constant dense<0.000000e+00> : vector<8x256xf32>
    %96 = tpu.matmul %95, %94, %cst_52 {dimension_numbers = #tpu.dot_dimension_numbers<[1], [0], [0], [1], [0, 0, 1, 1], [], []>} : vector<8x72xf32>, vector<72x256xf32>, vector<8x256xf32> -> vector<8x256xf32>
    %cst_53 = arith.constant dense<0.000000e+00> : vector<8xf32>
    %97 = vector.multi_reduction <add>, %96, %cst_53 [1] : vector<8x256xf32> to vector<8xf32>
    %98 = vector.shape_cast %97 : vector<8xf32> to vector<8x1xf32>
    %99 = arith.mulf %96, %96 : vector<8x256xf32>
    %cst_54 = arith.constant dense<0.000000e+00> : vector<8xf32>
    %100 = vector.multi_reduction <add>, %99, %cst_54 [1] : vector<8x256xf32> to vector<8xf32>
    %101 = vector.shape_cast %100 : vector<8xf32> to vector<8x1xf32>
    %cst_55 = arith.constant 3.906250e-03 : f32
    %102 = vector.broadcast %cst_55 : f32 to vector<8x1xf32>
    %103 = arith.mulf %98, %102 : vector<8x1xf32>
    %cst_56 = arith.constant 3.906250e-03 : f32
    %104 = vector.broadcast %cst_56 : f32 to vector<8x1xf32>
    %105 = arith.mulf %101, %104 : vector<8x1xf32>
    %106 = arith.mulf %103, %103 : vector<8x1xf32>
    %107 = arith.subf %105, %106 : vector<8x1xf32>
    %cst_57 = arith.constant 0.000000e+00 : f32
    %108 = vector.broadcast %cst_57 : f32 to vector<8x1xf32>
    %109 = arith.maximumf %107, %108 : vector<8x1xf32>
    %c0_58 = arith.constant 0 : index
    %c0_59 = arith.constant 0 : index
    %110 = vector.load %arg6[%c0_58, %c0_59] : memref<8x1xf32, #tpu.memory_space<vmem>>, vector<8x1xf32>
    %cst_60 = arith.constant 9.99999974E-6 : f32
    %111 = vector.broadcast %cst_60 : f32 to vector<8x1xf32>
    %112 = arith.addf %109, %111 : vector<8x1xf32>
    %113 = math.rsqrt %112 : vector<8x1xf32>
    %114 = arith.mulf %110, %113 : vector<8x1xf32>
    %c0_61 = arith.constant 0 : index
    %c0_62 = arith.constant 0 : index
    %115 = vector.load %arg7[%c0_61, %c0_62] : memref<8x1xf32, #tpu.memory_space<vmem>>, vector<8x1xf32>
    %116 = arith.mulf %103, %114 : vector<8x1xf32>
    %117 = arith.subf %115, %116 : vector<8x1xf32>
    %118 = vector.broadcast %114 : vector<8x1xf32> to vector<8x256xf32>
    %119 = arith.mulf %96, %118 : vector<8x256xf32>
    %120 = vector.broadcast %117 : vector<8x1xf32> to vector<8x256xf32>
    %121 = arith.addf %119, %120 : vector<8x256xf32>
    %122 = arith.addf %33, %121 : vector<8x256xf32>
    %c0_63 = arith.constant 0 : index
    %c0_64 = arith.constant 0 : index
    %c0_65 = arith.constant 0 : index
    %123 = vector.load %arg8[%c0_63, %c0_64, %c0_65] : memref<1x8x256xf32, #tpu.memory_space<vmem>>, vector<1x8x256xf32>
    %124 = vector.shape_cast %123 : vector<1x8x256xf32> to vector<8x256xf32>
    %125 = vector.shape_cast %122 : vector<8x256xf32> to vector<1x8x256xf32>
    tpu.vector_store %arg8[%c0_63, %c0_64, %c0_65], %125 {strides = array<i32>} : memref<1x8x256xf32, #tpu.memory_space<vmem>>, vector<1x8x256xf32>,
    return
  }
  func.func @transform_0(%arg0: i32) -> (i32, i32, i32) {
    %c0_i32 = arith.constant 0 : i32
    %c0_i32_0 = arith.constant 0 : i32
    %c0_i32_1 = arith.constant 0 : i32
    return %arg0, %c0_i32, %c0_i32_0 : i32, i32, i32
  }
  func.func @transform_1(%arg0: i32) -> (i32, i32) {
    %c0_i32 = arith.constant 0 : i32
    %c0_i32_0 = arith.constant 0 : i32
    %c0_i32_1 = arith.constant 0 : i32
    return %c0_i32, %c0_i32_0 : i32, i32
  }
  func.func @transform_2(%arg0: i32) -> (i32, i32) {
    %c0_i32 = arith.constant 0 : i32
    %c0_i32_0 = arith.constant 0 : i32
    %c0_i32_1 = arith.constant 0 : i32
    return %c0_i32, %c0_i32_0 : i32, i32
  }
  func.func @transform_3(%arg0: i32) -> (i32, i32) {
    %c0_i32 = arith.constant 0 : i32
    %c0_i32_0 = arith.constant 0 : i32
    %c0_i32_1 = arith.constant 0 : i32
    return %c0_i32, %c0_i32_0 : i32, i32
  }
  func.func @transform_4(%arg0: i32) -> (i32, i32) {
    %c0_i32 = arith.constant 0 : i32
    %c0_i32_0 = arith.constant 0 : i32
    %c0_i32_1 = arith.constant 0 : i32
    return %c0_i32, %c0_i32_0 : i32, i32
  }
  func.func @transform_5(%arg0: i32) -> (i32, i32) {
    %c0_i32 = arith.constant 0 : i32
    %c0_i32_0 = arith.constant 0 : i32
    %c0_i32_1 = arith.constant 0 : i32
    return %c0_i32, %c0_i32_0 : i32, i32
  }
  func.func @transform_6(%arg0: i32) -> (i32, i32) {
    %c0_i32 = arith.constant 0 : i32
    %c0_i32_0 = arith.constant 0 : i32
    %c0_i32_1 = arith.constant 0 : i32
    return %c0_i32, %c0_i32_0 : i32, i32
  }
  func.func @transform_7(%arg0: i32) -> (i32, i32, i32) {
    %c0_i32 = arith.constant 0 : i32
    %c0_i32_0 = arith.constant 0 : i32
    %c0_i32_1 = arith.constant 0 : i32
    return %arg0, %c0_i32, %c0_i32_0 : i32, i32, i32
  }
}

</mosaic_0001>

<llo_original>
// kernel: tpu_custom_call.1
$region0: #{tpu_custom_call.1}
  #allocation0 [shape = 'u32[]', space=smem, size = 0x4, offset = 0x4, fixed_abs, tag = 'smem constant byte address 0x4 - core index']
  #allocation1 [shape = 'u32[144,128]{1,0:T(1,128)}', space=vmem, size = 0x12000, scoped, tag = 'internal scratch']
  #allocation2 [shape = 'f32[8,512]{1,0:T(8,128)}', space=vmem, size = 0x4000, scoped, tag = 'scratch operand']
  %s0 = inlined_call_operand.vmem [shape: f32[2,8,256], index: 0, kind: input, shape index: {}]
  %s1 = inlined_call_operand.hbm [shape: f32[8,72], index: 1, kind: input, shape index: {}]
  %s2 = inlined_call_operand.vmem [shape: f32[8,1], index: 2, kind: input, shape index: {}]
  %s3 = inlined_call_operand.vmem [shape: f32[8,1], index: 3, kind: input, shape index: {}]
  %s4 = inlined_call_operand.vmem [shape: f32[8,72], index: 4, kind: input, shape index: {}]
  %s5 = inlined_call_operand.vmem [shape: f32[8,1], index: 5, kind: input, shape index: {}]
  %s6 = inlined_call_operand.vmem [shape: f32[8,1], index: 6, kind: input, shape index: {}]
  %s7 = inlined_call_operand.hbm [shape: f32[2,8,256], index: 7, kind: output, shape index: {}]
  %s8 = sld [smem:[#allocation0]]
  $region65: #{tpu_custom_call.1} parent=0
    _
  %s10 = ssub.s32 1, %s8
  %s11 = scalar_select 0, %s10, %s8
  $region1: #{tpu_custom_call.1} parent=0
    #allocation3 [shape = 'u8[4096]{0}', space=vmem, size = 0x1000, scoped, tag = 'input window, operand 1, single buffered']
    #allocation4 [shape = 's32[2]{0}', space=sflag, size = 0x8, scoped, tag = 'scoped memory for tpu_custom_call.1']
    #allocation5 [shape = 's32[2]{0}', space=sflag, size = 0x8, scoped, tag = 'scoped memory for tpu_custom_call.1']
    #allocation6 [shape = 'u8[16384]{0}', space=vmem, size = 0x4000, scoped, tag = 'output window, operand 0']
    %12 = vsyncpa [#allocation4], 0
    %13 = vsyncpa [#allocation5], 0
    %s14 = scalar_lea.sflag [#allocation5], 1
    %15 = vsyncpa %s14, 0
    loop: start=0, step=1, limit=4
    $region2: #{tpu_custom_call.1} parent=1 // loop_pre_header
      _
    $region3: #{tpu_custom_call.1} parent=1 // loop_header
      %s17 = sphi 0, %s21
      %p18 = scmp.ge.s32.totalorder %s17, 4
      %s27 = sphi 0, %s29
      %s30 = sphi 0, %s27
      %s31 = sphi 0, %s30
      %s47 = sphi 0, %s31
      %s51 = sphi 0, %s51
      %s53 = sphi 0, %s51
      %s54 = sphi 0, %s53
      %s68 = sphi 0, %s54
      %s72 = sphi 0, %s72
      %s74 = sphi 0, %s72
      %s75 = sphi 0, %s74
      %s89 = sphi 0, %s75
      %s93 = sphi 0, %s93
      %s95 = sphi 0, %s93
      %s96 = sphi 0, %s95
      %s110 = sphi 0, %s96
      %s114 = sphi 0, %s114
      %s116 = sphi 0, %s114
      %s117 = sphi 0, %s116
      %s131 = sphi 0, %s117
      %s135 = sphi 0, %s135
      %s137 = sphi 0, %s135
      %s138 = sphi 0, %s137
      %s152 = sphi 0, %s138
      %s156 = sphi 0, %s156
      %s158 = sphi 0, %s156
      %s159 = sphi 0, %s158
      %s173 = sphi 0, %s159
      %s179 = sphi 0, %s181
      %s182 = sphi 0, %s179
      %s183 = sphi 0, %s182
      %s199 = sphi 0, %s183
    $region4: #{tpu_custom_call.1} parent=1 // loop_header_branch
      %20 = sbr.rel (%p18) target = $region8
    $region5: #{tpu_custom_call.1} parent=1 // loop_body
      %s22 = ssub.s32 %s17, 1
      %s23 = ssub.s32 %s17, 2
      %s24 = sadd.s32 %s17, 1
      %s25 = ssub.s32 %s17, %s24
      %p26 = scmp.eq.s32.totalorder %s25, 0
      %s28 = sadd.s32 %s27, 1
      %s29 = scalar_select %p26, %s27, %s28
      %p32 = pneg %p26
      %p33 = scmp.eq.s32.totalorder %s17, 1
      %p34 = por %p32, %p33
      %p35 = scmp.ne.s32.totalorder %s27, %s30
      %p36 = scmp.eq.s32.totalorder %s17, 0
      %p37 = por %p35, %p36
      %p38 = scmp.ne.s32.totalorder %s27, %s30
      %p39 = scmp.eq.s32.totalorder %s22, 1
      %p40 = por %p38, %p39
      %p41 = scmp.ne.s32.totalorder %s30, %s31
      %p42 = scmp.eq.s32.totalorder %s22, 0
      %p43 = por %p41, %p42
      %p44 = scmp.ne.s32.totalorder %s30, %s31
      %p45 = scmp.eq.s32.totalorder %s23, 1
      %p46 = por %p44, %p45
      %p48 = scmp.ne.s32.totalorder %s31, %s47
      %p49 = scmp.eq.s32.totalorder %s23, 0
      %p50 = por %p48, %p49
      %s52 = sadd.s32 %s51, 1
      %p55 = scmp.eq.s32.totalorder %s17, 1
      %p56 = scmp.ne.s32.totalorder %s51, %s53
      %p57 = scmp.eq.s32.totalorder %s17, 0
      %p58 = por %p56, %p57
      %p59 = scmp.ne.s32.totalorder %s51, %s53
      %p60 = scmp.eq.s32.totalorder %s22, 1
      %p61 = por %p59, %p60
      %p62 = scmp.ne.s32.totalorder %s53, %s54
      %p63 = scmp.eq.s32.totalorder %s22, 0
      %p64 = por %p62, %p63
      %p65 = scmp.ne.s32.totalorder %s53, %s54
      %p66 = scmp.eq.s32.totalorder %s23, 1
      %p67 = por %p65, %p66
      %p69 = scmp.ne.s32.totalorder %s54, %s68
      %p70 = scmp.eq.s32.totalorder %s23, 0
      %p71 = por %p69, %p70
      %s73 = sadd.s32 %s72, 1
      %p76 = scmp.eq.s32.totalorder %s17, 1
      %p77 = scmp.ne.s32.totalorder %s72, %s74
      %p78 = scmp.eq.s32.totalorder %s17, 0
      %p79 = por %p77, %p78
      %p80 = scmp.ne.s32.totalorder %s72, %s74
      %p81 = scmp.eq.s32.totalorder %s22, 1
      %p82 = por %p80, %p81
      %p83 = scmp.ne.s32.totalorder %s74, %s75
      %p84 = scmp.eq.s32.totalorder %s22, 0
      %p85 = por %p83, %p84
      %p86 = scmp.ne.s32.totalorder %s74, %s75
      %p87 = scmp.eq.s32.totalorder %s23, 1
      %p88 = por %p86, %p87
      %p90 = scmp.ne.s32.totalorder %s75, %s89
      %p91 = scmp.eq.s32.totalorder %s23, 0
      %p92 = por %p90, %p91
      %s94 = sadd.s32 %s93, 1
      %p97 = scmp.eq.s32.totalorder %s17, 1
      %p98 = scmp.ne.s32.totalorder %s93, %s95
      %p99 = scmp.eq.s32.totalorder %s17, 0
      %p100 = por %p98, %p99
      %p101 = scmp.ne.s32.totalorder %s93, %s95
      %p102 = scmp.eq.s32.totalorder %s22, 1
      %p103 = por %p101, %p102
      %p104 = scmp.ne.s32.totalorder %s95, %s96
      %p105 = scmp.eq.s32.totalorder %s22, 0
      %p106 = por %p104, %p105
      %p107 = scmp.ne.s32.totalorder %s95, %s96
      %p108 = scmp.eq.s32.totalorder %s23, 1
      %p109 = por %p107, %p108
      %p111 = scmp.ne.s32.totalorder %s96, %s110
      %p112 = scmp.eq.s32.totalorder %s23, 0
      %p113 = por %p111, %p112
      %s115 = sadd.s32 %s114, 1
      %p118 = scmp.eq.s32.totalorder %s17, 1
      %p119 = scmp.ne.s32.totalorder %s114, %s116
      %p120 = scmp.eq.s32.totalorder %s17, 0
      %p121 = por %p119, %p120
      %p122 = scmp.ne.s32.totalorder %s114, %s116
      %p123 = scmp.eq.s32.totalorder %s22, 1
      %p124 = por %p122, %p123
      %p125 = scmp.ne.s32.totalorder %s116, %s117
      %p126 = scmp.eq.s32.totalorder %s22, 0
      %p127 = por %p125, %p126
      %p128 = scmp.ne.s32.totalorder %s116, %s117
      %p129 = scmp.eq.s32.totalorder %s23, 1
      %p130 = por %p128, %p129
      %p132 = scmp.ne.s32.totalorder %s117, %s131
      %p133 = scmp.eq.s32.totalorder %s23, 0
      %p134 = por %p132, %p133
      %s136 = sadd.s32 %s135, 1
      %p139 = scmp.eq.s32.totalorder %s17, 1
      %p140 = scmp.ne.s32.totalorder %s135, %s137
      %p141 = scmp.eq.s32.totalorder %s17, 0
      %p142 = por %p140, %p141
      %p143 = scmp.ne.s32.totalorder %s135, %s137
      %p144 = scmp.eq.s32.totalorder %s22, 1
      %p145 = por %p143, %p144
      %p146 = scmp.ne.s32.totalorder %s137, %s138
      %p147 = scmp.eq.s32.totalorder %s22, 0
      %p148 = por %p146, %p147
      %p149 = scmp.ne.s32.totalorder %s137, %s138
      %p150 = scmp.eq.s32.totalorder %s23, 1
      %p151 = por %p149, %p150
      %p153 = scmp.ne.s32.totalorder %s138, %s152
      %p154 = scmp.eq.s32.totalorder %s23, 0
      %p155 = por %p153, %p154
      %s157 = sadd.s32 %s156, 1
      %p160 = scmp.eq.s32.totalorder %s17, 1
      %p161 = scmp.ne.s32.totalorder %s156, %s158
      %p162 = scmp.eq.s32.totalorder %s17, 0
      %p163 = por %p161, %p162
      %p164 = scmp.ne.s32.totalorder %s156, %s158
      %p165 = scmp.eq.s32.totalorder %s22, 1
      %p166 = por %p164, %p165
      %p167 = scmp.ne.s32.totalorder %s158, %s159
      %p168 = scmp.eq.s32.totalorder %s22, 0
      %p169 = por %p167, %p168
      %p170 = scmp.ne.s32.totalorder %s158, %s159
      %p171 = scmp.eq.s32.totalorder %s23, 1
      %p172 = por %p170, %p171
      %p174 = scmp.ne.s32.totalorder %s159, %s173
      %p175 = scmp.eq.s32.totalorder %s23, 0
      %p176 = por %p174, %p175
      %s177 = ssub.s32 %s17, %s24
      %p178 = scmp.eq.s32.totalorder %s177, 0
      %s180 = sadd.s32 %s179, 1
      %s181 = scalar_select %p178, %s179, %s180
      %p184 = pneg %p178
      %p185 = scmp.eq.s32.totalorder %s17, 1
      %p186 = por %p184, %p185
      %p187 = scmp.ne.s32.totalorder %s179, %s182
      %p188 = scmp.eq.s32.totalorder %s17, 0
      %p189 = por %p187, %p188
      %p190 = scmp.ne.s32.totalorder %s179, %s182
      %p191 = scmp.eq.s32.totalorder %s22, 1
      %p192 = por %p190, %p191
      %p193 = scmp.ne.s32.totalorder %s182, %s183
      %p194 = scmp.eq.s32.totalorder %s22, 0
      %p195 = por %p193, %p194
      %p196 = scmp.ne.s32.totalorder %s182, %s183
      %p197 = scmp.eq.s32.totalorder %s23, 1
      %p198 = por %p196, %p197
      %p200 = scmp.ne.s32.totalorder %s183, %s199
      %p201 = scmp.eq.s32.totalorder %s23, 0
      %p202 = por %p200, %p201
      %p203 = scmp.le.s32.totalorder 1, %s17
      %p204 = scmp.lt.s32.totalorder %s17, 3
      %p205 = pnand %p203, %p204
      %p206 = pneg %p205
      // Predicated region
      $region9: #{tpu_custom_call.1} parent=5 // pred_check
        _
      $region10: #{tpu_custom_call.1} parent=5 // pred_check_branch
        %208 = sbr.rel (%p205) target = $region12
      $region11: #{tpu_custom_call.1} parent=5 // pred_region
        %s209 = ssub.s32 %s17, 1
        // Predicated region
        $region13: #{tpu_custom_call.1} parent=11 // pred_check
          %p210 = pneg %p64
        $region14: #{tpu_custom_call.1} parent=11 // pred_check_branch
          %212 = sbr.rel (%p210) target = $region16
        $region15: #{tpu_custom_call.1} parent=11 // pred_region
          %s214 = ssub.s32 128, 128
          %215 = vsyncadd [#allocation4], %s214
          %s217 = sshll.u32 [#allocation3], 4
          %s218 = int_to_ptr.vmem [resolvable:$true] %s217
          %220 = dma.hbm_to_vmem [thread:$0]  %s1, 128, %s218, [#allocation4]
        $region16: #{tpu_custom_call.1} parent=11 // pred_fallthru
          _
        // Predicated region
        $region17: #{tpu_custom_call.1} parent=11 // pred_check
          %p221 = pneg %p85
        $region18: #{tpu_custom_call.1} parent=11 // pred_check_branch
          %223 = sbr.rel (%p221) target = $region20
        $region19: #{tpu_custom_call.1} parent=11 // pred_region
          _
        $region20: #{tpu_custom_call.1} parent=11 // pred_fallthru
          _
        // Predicated region
        $region21: #{tpu_custom_call.1} parent=11 // pred_check
          %p224 = pneg %p106
        $region22: #{tpu_custom_call.1} parent=11 // pred_check_branch
          %226 = sbr.rel (%p224) target = $region24
        $region23: #{tpu_custom_call.1} parent=11 // pred_region
          _
        $region24: #{tpu_custom_call.1} parent=11 // pred_fallthru
          _
        // Predicated region
        $region25: #{tpu_custom_call.1} parent=11 // pred_check
          %p227 = pneg %p127
        $region26: #{tpu_custom_call.1} parent=11 // pred_check_branch
          %229 = sbr.rel (%p227) target = $region28
        $region27: #{tpu_custom_call.1} parent=11 // pred_region
          _
        $region28: #{tpu_custom_call.1} parent=11 // pred_fallthru
          _
        // Predicated region
        $region29: #{tpu_custom_call.1} parent=11 // pred_check
          %p230 = pneg %p148
        $region30: #{tpu_custom_call.1} parent=11 // pred_check_branch
          %232 = sbr.rel (%p230) target = $region32
        $region31: #{tpu_custom_call.1} parent=11 // pred_region
          _
        $region32: #{tpu_custom_call.1} parent=11 // pred_fallthru
          _
        // Predicated region
        $region33: #{tpu_custom_call.1} parent=11 // pred_check
          %p233 = pneg %p169
        $region34: #{tpu_custom_call.1} parent=11 // pred_check_branch
          %235 = sbr.rel (%p233) target = $region36
        $region35: #{tpu_custom_call.1} parent=11 // pred_region
          _
        $region36: #{tpu_custom_call.1} parent=11 // pred_fallthru
          _
      $region12: #{tpu_custom_call.1} parent=5 // pred_fallthru
        _
      %p236 = scmp.lt.s32.totalorder %s17, 2
      // Predicated region
      $region37: #{tpu_custom_call.1} parent=5 // pred_check
        %p237 = pneg %p236
      $region38: #{tpu_custom_call.1} parent=5 // pred_check_branch
        %239 = sbr.rel (%p237) target = $region40
      $region39: #{tpu_custom_call.1} parent=5 // pred_region
        // Predicated region
        $region41: #{tpu_custom_call.1} parent=39 // pred_check
          %p240 = pneg %p37
        $region42: #{tpu_custom_call.1} parent=39 // pred_check_branch
          %242 = sbr.rel (%p240) target = $region44
        $region43: #{tpu_custom_call.1} parent=39 // pred_region
          %p243 = scmp.lt.s32.totalorder %s17, 1
          %s244 = scalar_select %p243, %s17, 1
          %s245 = smul.addr %s244, 2
          %s246 = smul.addr %s245, 8
          %s247 = scalar_lea.vmem %s0, %s246
        $region44: #{tpu_custom_call.1} parent=39 // pred_fallthru
          _
      $region40: #{tpu_custom_call.1} parent=5 // pred_fallthru
        _
      %p248 = scmp.le.s32.totalorder 1, %s17
      %p249 = scmp.lt.s32.totalorder %s17, 3
      %p250 = pnand %p248, %p249
      %p251 = pneg %p250
      // Predicated region
      $region45: #{tpu_custom_call.1} parent=5 // pred_check
        _
      $region46: #{tpu_custom_call.1} parent=5 // pred_check_branch
        %253 = sbr.rel (%p250) target = $region48
      $region47: #{tpu_custom_call.1} parent=5 // pred_region
        %s254 = ssub.s32 %s17, 1
        // Predicated region
        $region49: #{tpu_custom_call.1} parent=47 // pred_check
          %p255 = pneg %p64
        $region50: #{tpu_custom_call.1} parent=47 // pred_check_branch
          %257 = sbr.rel (%p255) target = $region52
        $region51: #{tpu_custom_call.1} parent=47 // pred_region
          %258 = dma.done [#allocation4], 128
        $region52: #{tpu_custom_call.1} parent=47 // pred_fallthru
          _
        %p259 = scmp.lt.s32.totalorder %s22, 1
        %s260 = scalar_select %p259, %s22, 1
        %s261 = smul.addr %s260, 2
        %s262 = smul.addr %s261, 8
        %s263 = scalar_lea.vmem %s0, %s262
        %p264 = pneg %p43
        %p265 = pneg %p40
        %p266 = pneg %p64
        %p267 = pneg %p61
        %p268 = pneg %p85
        %p269 = pneg %p82
        %p270 = pneg %p106
        %p271 = pneg %p103
        %p272 = pneg %p127
        %p273 = pneg %p124
        %p274 = pneg %p148
        %p275 = pneg %p145
        %p276 = pneg %p169
        %p277 = pneg %p166
        %p278 = pneg %p195
        %p279 = pneg %p192
        %s280 = sand.u32 %s182, 1
        %s281 = scalar_lea.sflag [#allocation5], %s280
        %s282 = sand.u32 %s182, 1
        %s283 = smul.addr %s282, 16
        %s284 = scalar_lea.vmem [#allocation6], %s283
        %p285 = scmp.lt.s32.totalorder %s22, 1
        %s286 = scalar_select %p285, %s22, 1
        %s287 = smul.addr %s286, 2
        %s288 = smul.addr %s287, 8
        %s289 = scalar_lea.vmem %s0, %s288
        %290 = vst [vmem:[#allocation2] sm:$0xff] 0.0
        %291 = vst [vmem:[#allocation2 + $0x18] sm:$0xff] 0.0
        %v292 = vlaneseq
        %v293 = vand.u32 %v292, 127
        %v294 = vadd.s32 %v293, 128
        %vm295 = vcmp.lt.s32.totalorder %v293, 0
        %v296 = vsub.s32 0, %v293
        %v297 = vsel %vm295, %v296, %v293
        %v298 = vshrl.u32 %v297, 4
        %v299 = vand.u32 %v297, 15
        %v300 = vsub.s32 0, %v299
        %v301 = vsel %vm295, %v300, %v299
        %vm302 = vcmp.lt.s32.totalorder %v294, 0
        %v303 = vsub.s32 0, %v294
        %v304 = vsel %vm302, %v303, %v294
        %v305 = vshrl.u32 %v304, 4
        %v306 = vand.u32 %v304, 15
        %v307 = vsub.s32 0, %v306
        %v308 = vsel %vm302, %v307, %v306
        %vm309 = vcmp.ne.s32.totalorder %v301, 0
        %vm310 = vcmp.ne.s32.totalorder %v308, 0
        %vm311 = vcmp.lt.s32.totalorder %v301, 0
        %vm312 = vcmp.lt.s32.totalorder %v308, 0
        %vm313 = vmand %vm311, %vm309
        %vm314 = vmand %vm312, %vm310
        %v315 = vadd.s32 %v301, 16
        %v316 = vadd.s32 %v308, 16
        %v317 = vsel %vm313, %v315, %v301
        %v318 = vsel %vm314, %v316, %v308
        %vm319 = vcmp.ge.s32.totalorder %v317, 1
        %vm320 = vcmp.ge.s32.totalorder %v318, 1
        %v321 = vsel %vm319, 1, 0
        %v322 = vsel %vm320, 1, 0
        %v323 = vcvt.s32.f32 %v321
        %v324 = vcvt.s32.f32 %v322
        %vm325 = vcmp.lt.s32.totalorder %v317, 15
        %vm326 = vcmp.lt.s32.totalorder %v318, 15
        %v327 = vsel %vm325, 1, 0
        %v328 = vsel %vm326, 1, 0
        %v329 = vcvt.s32.f32 %v327
        %v330 = vcvt.s32.f32 %v328
        %v331 = vld [vmem:[%s289] sm:$0xff]
        %v332 = vld [vmem:[%s289 + $0x8] sm:$0xff]
        %333 = vst [vmem:[#allocation2 + $0x8] sm:$0xff] %v331
        %334 = vst [vmem:[#allocation2 + $0x10] sm:$0xff] %v332
        %v335 = vld [vmem:[#allocation2] sm:$0xff]
        %v336 = vld [vmem:[#allocation2 + $0x8] sm:$0xff]
        %v337 = vld [vmem:[#allocation2 + $0x10] sm:$0xff]
        %340 = vrot.lane.b32.xlu0 %v323, 111
        %v341 = vpop.permute.xlu0 %340
        %342 = vrot.lane.b32.xlu0 %v324, 111
        %v343 = vpop.permute.xlu0 %342
        %vm344 = vcmask 908288
        %v345 = vsel %vm344, %v341, %v343
        %v349 = vmul.f32 %v335, %v341
        %v350 = vmul.f32 %v336, %v345
        %v351 = vmul.f32 %v337, %v343
        %352 = vrot.lane.b32.xlu0 %v323, 127
        %v353 = vpop.permute.xlu0 %352
        %354 = vrot.lane.b32.xlu0 %v324, 127
        %v355 = vpop.permute.xlu0 %354
        %vm356 = vcmask 1039360
        %v357 = vsel %vm356, %v353, %v355
        %v361 = vmul.f32 %v335, %v353
        %v362 = vmul.f32 %v336, %v357
        %v363 = vmul.f32 %v337, %v355
        %v364 = vld [vmem:[#allocation2 + $0x8] sm:$0xff]
        %v365 = vld [vmem:[#allocation2 + $0x10] sm:$0xff]
        %v366 = vld [vmem:[#allocation2 + $0x18] sm:$0xff]
        %367 = vrot.lane.b32.xlu0 %v323, 15
        %v368 = vpop.permute.xlu0 %367
        %369 = vrot.lane.b32.xlu0 %v324, 15
        %v370 = vpop.permute.xlu0 %369
        %vm371 = vcmask 121856
        %v372 = vsel %vm371, %v368, %v370
        %v376 = vmul.f32 %v364, %v368
        %v377 = vmul.f32 %v365, %v372
        %v378 = vmul.f32 %v366, %v370
        %381 = vrot.lane.b32.xlu0 %v329, 113
        %v382 = vpop.permute.xlu0 %381
        %383 = vrot.lane.b32.xlu0 %v330, 113
        %v384 = vpop.permute.xlu0 %383
        %vm385 = vcmask 924672
        %v386 = vsel %vm385, %v382, %v384
        %v390 = vmul.f32 %v335, %v382
        %v391 = vmul.f32 %v336, %v386
        %v392 = vmul.f32 %v337, %v384
        %393 = vrot.lane.b32.xlu0 %v329, 1
        %v394 = vpop.permute.xlu0 %393
        %395 = vrot.lane.b32.xlu0 %v330, 1
        %v396 = vpop.permute.xlu0 %395
        %vm397 = vcmask 7168
        %v398 = vsel %vm397, %v394, %v396
        %v402 = vmul.f32 %v364, %v394
        %v403 = vmul.f32 %v365, %v398
        %v404 = vmul.f32 %v366, %v396
        %405 = vrot.lane.b32.xlu0 %v329, 17
        %v406 = vpop.permute.xlu0 %405
        %407 = vrot.lane.b32.xlu0 %v330, 17
        %v408 = vpop.permute.xlu0 %407
        %vm409 = vcmask 138240
        %v410 = vsel %vm409, %v406, %v408
        %v414 = vmul.f32 %v364, %v406
        %v415 = vmul.f32 %v365, %v410
        %v416 = vmul.f32 %v366, %v408
        %420 = vrot.lane.b32.xlu0 %v361, 112
        %v421 = vpop.permute.xlu0 %420
        %422 = vrot.lane.b32.xlu0 %v362, 112
        %v423 = vpop.permute.xlu0 %422
        %424 = vrot.lane.b32.xlu0 %v363, 112
        %v425 = vpop.permute.xlu0 %424
        %vm426 = vcmask 916480
        %v427 = vsel %vm426, %v421, %v423
        %v428 = vsel %vm426, %v423, %v425
        %432 = vrot.lane.b32.xlu0 %v376, 96
        %v433 = vpop.permute.xlu0 %432
        %434 = vrot.lane.b32.xlu0 %v377, 96
        %v435 = vpop.permute.xlu0 %434
        %436 = vrot.lane.b32.xlu0 %v378, 96
        %v437 = vpop.permute.xlu0 %436
        %vm438 = vcmask 785408
        %v439 = vsel %vm438, %v433, %v435
        %v440 = vsel %vm438, %v435, %v437
        %444 = vrot.lane.b32.xlu0 %v335, 127
        %v445 = vpop.permute.xlu0 %444
        %446 = vrot.lane.b32.xlu0 %v336, 127
        %v447 = vpop.permute.xlu0 %446
        %448 = vrot.lane.b32.xlu0 %v337, 127
        %v449 = vpop.permute.xlu0 %448
        %v450 = vsel %vm356, %v445, %v447
        %v451 = vsel %vm356, %v447, %v449
        %454 = vrot.lane.b32.xlu0 %v331, 111
        %v455 = vpop.permute.xlu0 %454
        %456 = vrot.lane.b32.xlu0 %v332, 111
        %v457 = vpop.permute.xlu0 %456
        %v458 = vsel %vm344, %v455, %v457
        %462 = vrot.lane.b32.xlu0 %v364, 95
        %v463 = vpop.permute.xlu0 %462
        %464 = vrot.lane.b32.xlu0 %v365, 95
        %v465 = vpop.permute.xlu0 %464
        %466 = vrot.lane.b32.xlu0 %v366, 95
        %v467 = vpop.permute.xlu0 %466
        %vm468 = vcmask 777216
        %v469 = vsel %vm468, %v463, %v465
        %v470 = vsel %vm468, %v465, %v467
        %474 = vrot.lane.b32.xlu0 %v390, 126
        %v475 = vpop.permute.xlu0 %474
        %476 = vrot.lane.b32.xlu0 %v391, 126
        %v477 = vpop.permute.xlu0 %476
        %478 = vrot.lane.b32.xlu0 %v392, 126
        %v479 = vpop.permute.xlu0 %478
        %vm480 = vcmask 1031168
        %v481 = vsel %vm480, %v475, %v477
        %v482 = vsel %vm480, %v477, %v479
        %486 = vrot.lane.b32.xlu0 %v402, 110
        %v487 = vpop.permute.xlu0 %486
        %488 = vrot.lane.b32.xlu0 %v403, 110
        %v489 = vpop.permute.xlu0 %488
        %490 = vrot.lane.b32.xlu0 %v404, 110
        %v491 = vpop.permute.xlu0 %490
        %vm492 = vcmask 900096
        %v493 = vsel %vm492, %v487, %v489
        %v494 = vsel %vm492, %v489, %v491
        %498 = vrot.lane.b32.xlu0 %v414, 94
        %v499 = vpop.permute.xlu0 %498
        %500 = vrot.lane.b32.xlu0 %v415, 94
        %v501 = vpop.permute.xlu0 %500
        %502 = vrot.lane.b32.xlu0 %v416, 94
        %v503 = vpop.permute.xlu0 %502
        %vm504 = vcmask 769024
        %v505 = vsel %vm504, %v499, %v501
        %v506 = vsel %vm504, %v501, %v503
        %v507 = vld [vmem:[#allocation3] sm:$0xff]
        %511 = vrot.lane.b32.xlu0 %v349, 17
        %v512 = vpop.permute.xlu0 %511
        %513 = vrot.lane.b32.xlu0 %v350, 17
        %v514 = vpop.permute.xlu0 %513
        %515 = vrot.lane.b32.xlu0 %v351, 17
        %v516 = vpop.permute.xlu0 %515
        %517 = vrot.lane.b32.xlu0 %v427, 17
        %v518 = vpop.permute.xlu0 %517
        %519 = vrot.lane.b32.xlu0 %v428, 17
        %v520 = vpop.permute.xlu0 %519
        %521 = vrot.lane.b32.xlu0 %v425, 17
        %v522 = vpop.permute.xlu0 %521
        %523 = vrot.lane.b32.xlu0 %v433, 17
        %v524 = vpop.permute.xlu0 %523
        %525 = vrot.lane.b32.xlu0 %v439, 17
        %v526 = vpop.permute.xlu0 %525
        %527 = vrot.lane.b32.xlu0 %v440, 17
        %v528 = vpop.permute.xlu0 %527
        %529 = vrot.lane.b32.xlu0 %v450, 17
        %v530 = vpop.permute.xlu0 %529
        %531 = vrot.lane.b32.xlu0 %v451, 17
        %v532 = vpop.permute.xlu0 %531
        %533 = vrot.lane.b32.xlu0 %v449, 17
        %v534 = vpop.permute.xlu0 %533
        %535 = vrot.lane.b32.xlu0 %v455, 17
        %v536 = vpop.permute.xlu0 %535
        %537 = vrot.lane.b32.xlu0 %v458, 17
        %v538 = vpop.permute.xlu0 %537
        %539 = vrot.lane.b32.xlu0 %v457, 17
        %v540 = vpop.permute.xlu0 %539
        %541 = vrot.lane.b32.xlu0 %v463, 17
        %v542 = vpop.permute.xlu0 %541
        %543 = vrot.lane.b32.xlu0 %v469, 17
        %v544 = vpop.permute.xlu0 %543
        %545 = vrot.lane.b32.xlu0 %v470, 17
        %v546 = vpop.permute.xlu0 %545
        %547 = vrot.lane.b32.xlu0 %v481, 17
        %v548 = vpop.permute.xlu0 %547
        %549 = vrot.lane.b32.xlu0 %v482, 17
        %v550 = vpop.permute.xlu0 %549
        %551 = vrot.lane.b32.xlu0 %v479, 17
        %v552 = vpop.permute.xlu0 %551
        %553 = vrot.lane.b32.xlu0 %v487, 17
        %v554 = vpop.permute.xlu0 %553
        %555 = vrot.lane.b32.xlu0 %v493, 17
        %v556 = vpop.permute.xlu0 %555
        %557 = vrot.lane.b32.xlu0 %v494, 17
        %v558 = vpop.permute.xlu0 %557
        %559 = vrot.lane.b32.xlu0 %v499, 17
        %v560 = vpop.permute.xlu0 %559
        %561 = vrot.lane.b32.xlu0 %v505, 17
        %v562 = vpop.permute.xlu0 %561
        %563 = vrot.lane.b32.xlu0 %v506, 17
        %v564 = vpop.permute.xlu0 %563
        %v565 = vsel %vm409, %v512, %v514
        %v566 = vsel %vm409, %v514, %v516
        %v567 = vsel %vm409, %v518, %v520
        %v568 = vsel %vm409, %v520, %v522
        %v569 = vsel %vm409, %v524, %v526
        %v570 = vsel %vm409, %v526, %v528
        %v571 = vsel %vm409, %v530, %v532
        %v572 = vsel %vm409, %v532, %v534
        %v573 = vsel %vm409, %v536, %v538
        %v574 = vsel %vm409, %v538, %v540
        %v575 = vsel %vm409, %v542, %v544
        %v576 = vsel %vm409, %v544, %v546
        %v577 = vsel %vm409, %v548, %v550
        %v578 = vsel %vm409, %v550, %v552
        %v579 = vsel %vm409, %v554, %v556
        %v580 = vsel %vm409, %v556, %v558
        %v581 = vsel %vm409, %v560, %v562
        %v582 = vsel %vm409, %v562, %v564
        %vm601 = vcmask 588800
        %v603 = vsel %vm601, %v507, 0
        %605 = vmatprep.subr.mxu0 %v566
        %606 = vmatpush1.msra.mxu0 %v565
        %607 = vmatprep.subr.mxu0 %v568
        %608 = vmatpush1.msra.mxu0 %v567
        %609 = vmatprep.subr.mxu0 %v570
        %610 = vmatpush1.msra.mxu0 %v569
        %611 = vmatprep.subr.mxu0 %v572
        %612 = vmatpush1.msra.mxu0 %v571
        %613 = vmatprep.subr.mxu0 %v574
        %614 = vmatpush1.msra.mxu0 %v573
        %615 = vmatprep.subr.mxu0 %v576
        %616 = vmatpush1.msra.mxu0 %v575
        %617 = vmatprep.subr.mxu0 %v578
        %618 = vmatpush1.msra.mxu0 %v577
        %619 = vmatprep.subr.mxu0 %v580
        %620 = vmatpush1.msra.mxu0 %v579
        %621 = vmatprep.subr.mxu0 %v582
        %622 = vmatpush1.msra.mxu0 %v581
        %623 = vmatprep.subr.mxu0 0.0
        %624 = vmatpush1.msra.mxu0 0.0
        %625 = vmatprep.subr.mxu0 0.0
        %626 = vmatpush1.msra.mxu0 0.0
        %627 = vmatprep.subr.mxu0 0.0
        %628 = vmatpush1.msra.mxu0 0.0
        %629 = vmatprep.subr.mxu0 0.0
        %630 = vmatpush1.msra.mxu0 0.0
        %631 = vmatprep.subr.mxu0 0.0
        %632 = vmatpush1.msra.mxu0 0.0
        %633 = vmatprep.subr.mxu0 0.0
        %634 = vmatpush1.msra.mxu0 0.0
        %635 = vmatprep.subr.mxu0 0.0
        %636 = vmatpush1.msra.mxu0 0.0
        %637 = vmatprep.subr.mxu0 0.0
        %638 = vmatpush1.msra.mxu0 0.0
        %639 = vmatprep.subr.mxu0 0.0
        %640 = vmatpush1.msra.mxu0 0.0
        %641 = vmatprep.subr.mxu0 0.0
        %642 = vmatpush1.msra.mxu0 0.0
        %643 = vmatprep.subr.mxu0 0.0
        %644 = vmatpush1.msra.mxu0 0.0
        %645 = vmatprep.subr.mxu0 0.0
        %646 = vmatpush1.msra.mxu0 0.0
        %647 = vmatprep.subr.mxu0 0.0
        %648 = vmatpush1.msra.mxu0 0.0
        %649 = vmatprep.subr.mxu0 0.0
        %650 = vmatpush1.msra.mxu0 0.0
        %651 = vmatprep.subr.mxu0 0.0
        %652 = vmatpush1.msra.mxu0 0.0
        %653 = vmatprep.subr.mxu0 0.0
        %654 = vmatpush1.msra.mxu0 0.0
        %655 = vmatprep.subr.mxu0 0.0
        %656 = vmatpush1.msra.mxu0 0.0
        %657 = vmatprep.subr.mxu0 0.0
        %658 = vmatpush1.msra.mxu0 0.0
        %659 = vmatprep.subr.mxu0 0.0
        %660 = vmatpush1.msra.mxu0 0.0
        %661 = vmatprep.subr.mxu0 0.0
        %662 = vmatpush1.msra.mxu0 0.0
        %663 = vmatprep.subr.mxu0 0.0
        %664 = vmatpush1.msra.mxu0 0.0
        %665 = vmatprep.subr.mxu0 0.0
        %666 = vmatpush1.msra.mxu0 0.0
        %667 = vmatprep.subr.mxu0 0.0
        %668 = vmatpush1.msra.mxu0 0.0
        %669 = vmatprep.mubr.f32.mxu0 0.0
        %670 = vmatmul.mubr.f32.gmra.mrb[0].mxu0 %v603
        %v671 = vpop.f32.mrb[0].mxu0
        %v672 = vadd.f32 0.0, %v671
        %v673 = vpop.f32.mrb[0].mxu0
        %v674 = vadd.f32 0.0, %v673
        %675 = vdwg.mxu0
        %v676 = vadd.f32 %v672, %v674
        %677 = vadd.xlane.f32.xlu0 %v676
        %v678 = vpop.xlane.xlu0 %677
        %v679 = vmul.f32 %v672, %v672
        %v680 = vmul.f32 %v674, %v674
        %v681 = vadd.f32 %v679, %v680
        %682 = vadd.xlane.f32.xlu0 %v681
        %v683 = vpop.xlane.xlu0 %682
        %v684 = vmul.f32 %v678, 0.00390625
        %v685 = vmul.f32 %v683, 0.00390625
        %v686 = vmul.f32 %v684, %v684
        %v687 = vsub.f32 %v685, %v686
        %v688 = vmax.f32 %v687, 0.0
        %v689 = vld [vmem:[%s2] sm:$0xff]
        %v690 = vadd.f32 %v688, 1e-05
        %v691 = vrsqrt.pop %v690
        %v692 = vmul.f32 %v689, %v691
        %v693 = vld [vmem:[%s3] sm:$0xff]
        %v694 = vmul.f32 %v684, %v692
        %v695 = vsub.f32 %v693, %v694
        %697 = vset.pattern.permute.xlu0 0
        %698 = vperm.xlu0 %697, %v692
        %v699 = vpop.permute.xlu0 %698
        %v701 = vmul.f32 %v672, %v699
        %v702 = vmul.f32 %v674, %v699
        %704 = vset.pattern.permute.xlu0 0
        %705 = vperm.xlu0 %704, %v695
        %v706 = vpop.permute.xlu0 %705
        %v708 = vadd.f32 %v701, %v706
        %v709 = vadd.f32 %v702, %v706
        %v710 = vmax.f32 %v708, 0.0
        %v711 = vmax.f32 %v709, 0.0
        %712 = vst [vmem:[#allocation2 + $0x8] sm:$0xff] %v710
        %713 = vst [vmem:[#allocation2 + $0x10] sm:$0xff] %v711
        %v714 = vld [vmem:[#allocation2] sm:$0xff]
        %v715 = vld [vmem:[#allocation2 + $0x8] sm:$0xff]
        %v716 = vld [vmem:[#allocation2 + $0x10] sm:$0xff]
        %v717 = vmul.f32 %v714, %v341
        %v718 = vmul.f32 %v715, %v345
        %v719 = vmul.f32 %v716, %v343
        %v720 = vmul.f32 %v714, %v353
        %v721 = vmul.f32 %v715, %v357
        %v722 = vmul.f32 %v716, %v355
        %v723 = vld [vmem:[#allocation2 + $0x8] sm:$0xff]
        %v724 = vld [vmem:[#allocation2 + $0x10] sm:$0xff]
        %v725 = vld [vmem:[#allocation2 + $0x18] sm:$0xff]
        %v726 = vmul.f32 %v723, %v368
        %v727 = vmul.f32 %v724, %v372
        %v728 = vmul.f32 %v725, %v370
        %v729 = vmul.f32 %v714, %v382
        %v730 = vmul.f32 %v715, %v386
        %v731 = vmul.f32 %v716, %v384
        %v732 = vmul.f32 %v723, %v394
        %v733 = vmul.f32 %v724, %v398
        %v734 = vmul.f32 %v725, %v396
        %v735 = vmul.f32 %v723, %v406
        %v736 = vmul.f32 %v724, %v410
        %v737 = vmul.f32 %v725, %v408
        %741 = vrot.lane.b32.xlu0 %v720, 112
        %v742 = vpop.permute.xlu0 %741
        %743 = vrot.lane.b32.xlu0 %v721, 112
        %v744 = vpop.permute.xlu0 %743
        %745 = vrot.lane.b32.xlu0 %v722, 112
        %v746 = vpop.permute.xlu0 %745
        %v747 = vsel %vm426, %v742, %v744
        %v748 = vsel %vm426, %v744, %v746
        %752 = vrot.lane.b32.xlu0 %v726, 96
        %v753 = vpop.permute.xlu0 %752
        %754 = vrot.lane.b32.xlu0 %v727, 96
        %v755 = vpop.permute.xlu0 %754
        %756 = vrot.lane.b32.xlu0 %v728, 96
        %v757 = vpop.permute.xlu0 %756
        %v758 = vsel %vm438, %v753, %v755
        %v759 = vsel %vm438, %v755, %v757
        %763 = vrot.lane.b32.xlu0 %v714, 127
        %v764 = vpop.permute.xlu0 %763
        %765 = vrot.lane.b32.xlu0 %v715, 127
        %v766 = vpop.permute.xlu0 %765
        %767 = vrot.lane.b32.xlu0 %v716, 127
        %v768 = vpop.permute.xlu0 %767
        %v769 = vsel %vm356, %v764, %v766
        %v770 = vsel %vm356, %v766, %v768
        %773 = vrot.lane.b32.xlu0 %v710, 111
        %v774 = vpop.permute.xlu0 %773
        %775 = vrot.lane.b32.xlu0 %v711, 111
        %v776 = vpop.permute.xlu0 %775
        %v777 = vsel %vm344, %v774, %v776
        %781 = vrot.lane.b32.xlu0 %v723, 95
        %v782 = vpop.permute.xlu0 %781
        %783 = vrot.lane.b32.xlu0 %v724, 95
        %v784 = vpop.permute.xlu0 %783
        %785 = vrot.lane.b32.xlu0 %v725, 95
        %v786 = vpop.permute.xlu0 %785
        %v787 = vsel %vm468, %v782, %v784
        %v788 = vsel %vm468, %v784, %v786
        %792 = vrot.lane.b32.xlu0 %v729, 126
        %v793 = vpop.permute.xlu0 %792
        %794 = vrot.lane.b32.xlu0 %v730, 126
        %v795 = vpop.permute.xlu0 %794
        %796 = vrot.lane.b32.xlu0 %v731, 126
        %v797 = vpop.permute.xlu0 %796
        %v798 = vsel %vm480, %v793, %v795
        %v799 = vsel %vm480, %v795, %v797
        %803 = vrot.lane.b32.xlu0 %v732, 110
        %v804 = vpop.permute.xlu0 %803
        %805 = vrot.lane.b32.xlu0 %v733, 110
        %v806 = vpop.permute.xlu0 %805
        %807 = vrot.lane.b32.xlu0 %v734, 110
        %v808 = vpop.permute.xlu0 %807
        %v809 = vsel %vm492, %v804, %v806
        %v810 = vsel %vm492, %v806, %v808
        %814 = vrot.lane.b32.xlu0 %v735, 94
        %v815 = vpop.permute.xlu0 %814
        %816 = vrot.lane.b32.xlu0 %v736, 94
        %v817 = vpop.permute.xlu0 %816
        %818 = vrot.lane.b32.xlu0 %v737, 94
        %v819 = vpop.permute.xlu0 %818
        %v820 = vsel %vm504, %v815, %v817
        %v821 = vsel %vm504, %v817, %v819
        %v822 = vld [vmem:[%s4] sm:$0xff]
        %826 = vrot.lane.b32.xlu0 %v717, 17
        %v827 = vpop.permute.xlu0 %826
        %828 = vrot.lane.b32.xlu0 %v718, 17
        %v829 = vpop.permute.xlu0 %828
        %830 = vrot.lane.b32.xlu0 %v719, 17
        %v831 = vpop.permute.xlu0 %830
        %832 = vrot.lane.b32.xlu0 %v747, 17
        %v833 = vpop.permute.xlu0 %832
        %834 = vrot.lane.b32.xlu0 %v748, 17
        %v835 = vpop.permute.xlu0 %834
        %836 = vrot.lane.b32.xlu0 %v746, 17
        %v837 = vpop.permute.xlu0 %836
        %838 = vrot.lane.b32.xlu0 %v753, 17
        %v839 = vpop.permute.xlu0 %838
        %840 = vrot.lane.b32.xlu0 %v758, 17
        %v841 = vpop.permute.xlu0 %840
        %842 = vrot.lane.b32.xlu0 %v759, 17
        %v843 = vpop.permute.xlu0 %842
        %844 = vrot.lane.b32.xlu0 %v769, 17
        %v845 = vpop.permute.xlu0 %844
        %846 = vrot.lane.b32.xlu0 %v770, 17
        %v847 = vpop.permute.xlu0 %846
        %848 = vrot.lane.b32.xlu0 %v768, 17
        %v849 = vpop.permute.xlu0 %848
        %850 = vrot.lane.b32.xlu0 %v774, 17
        %v851 = vpop.permute.xlu0 %850
        %852 = vrot.lane.b32.xlu0 %v777, 17
        %v853 = vpop.permute.xlu0 %852
        %854 = vrot.lane.b32.xlu0 %v776, 17
        %v855 = vpop.permute.xlu0 %854
        %856 = vrot.lane.b32.xlu0 %v782, 17
        %v857 = vpop.permute.xlu0 %856
        %858 = vrot.lane.b32.xlu0 %v787, 17
        %v859 = vpop.permute.xlu0 %858
        %860 = vrot.lane.b32.xlu0 %v788, 17
        %v861 = vpop.permute.xlu0 %860
        %862 = vrot.lane.b32.xlu0 %v798, 17
        %v863 = vpop.permute.xlu0 %862
        %864 = vrot.lane.b32.xlu0 %v799, 17
        %v865 = vpop.permute.xlu0 %864
        %866 = vrot.lane.b32.xlu0 %v797, 17
        %v867 = vpop.permute.xlu0 %866
        %868 = vrot.lane.b32.xlu0 %v804, 17
        %v869 = vpop.permute.xlu0 %868
        %870 = vrot.lane.b32.xlu0 %v809, 17
        %v871 = vpop.permute.xlu0 %870
        %872 = vrot.lane.b32.xlu0 %v810, 17
        %v873 = vpop.permute.xlu0 %872
        %874 = vrot.lane.b32.xlu0 %v815, 17
        %v875 = vpop.permute.xlu0 %874
        %876 = vrot.lane.b32.xlu0 %v820, 17
        %v877 = vpop.permute.xlu0 %876
        %878 = vrot.lane.b32.xlu0 %v821, 17
        %v879 = vpop.permute.xlu0 %878
        %v880 = vsel %vm409, %v827, %v829
        %v881 = vsel %vm409, %v829, %v831
        %v882 = vsel %vm409, %v833, %v835
        %v883 = vsel %vm409, %v835, %v837
        %v884 = vsel %vm409, %v839, %v841
        %v885 = vsel %vm409, %v841, %v843
        %v886 = vsel %vm409, %v845, %v847
        %v887 = vsel %vm409, %v847, %v849
        %v888 = vsel %vm409, %v851, %v853
        %v889 = vsel %vm409, %v853, %v855
        %v890 = vsel %vm409, %v857, %v859
        %v891 = vsel %vm409, %v859, %v861
        %v892 = vsel %vm409, %v863, %v865
        %v893 = vsel %vm409, %v865, %v867
        %v894 = vsel %vm409, %v869, %v871
        %v895 = vsel %vm409, %v871, %v873
        %v896 = vsel %vm409, %v875, %v877
        %v897 = vsel %vm409, %v877, %v879
        %v917 = vsel %vm601, %v822, 0
        %919 = vmatprep.subr.mxu0 %v881
        %920 = vmatpush1.msra.mxu0 %v880
        %921 = vmatprep.subr.mxu0 %v883
        %922 = vmatpush1.msra.mxu0 %v882
        %923 = vmatprep.subr.mxu0 %v885
        %924 = vmatpush1.msra.mxu0 %v884
        %925 = vmatprep.subr.mxu0 %v887
        %926 = vmatpush1.msra.mxu0 %v886
        %927 = vmatprep.subr.mxu0 %v889
        %928 = vmatpush1.msra.mxu0 %v888
        %929 = vmatprep.subr.mxu0 %v891
        %930 = vmatpush1.msra.mxu0 %v890
        %931 = vmatprep.subr.mxu0 %v893
        %932 = vmatpush1.msra.mxu0 %v892
        %933 = vmatprep.subr.mxu0 %v895
        %934 = vmatpush1.msra.mxu0 %v894
        %935 = vmatprep.subr.mxu0 %v897
        %936 = vmatpush1.msra.mxu0 %v896
        %937 = vmatprep.subr.mxu0 0.0
        %938 = vmatpush1.msra.mxu0 0.0
        %939 = vmatprep.subr.mxu0 0.0
        %940 = vmatpush1.msra.mxu0 0.0
        %941 = vmatprep.subr.mxu0 0.0
        %942 = vmatpush1.msra.mxu0 0.0
        %943 = vmatprep.subr.mxu0 0.0
        %944 = vmatpush1.msra.mxu0 0.0
        %945 = vmatprep.subr.mxu0 0.0
        %946 = vmatpush1.msra.mxu0 0.0
        %947 = vmatprep.subr.mxu0 0.0
        %948 = vmatpush1.msra.mxu0 0.0
        %949 = vmatprep.subr.mxu0 0.0
        %950 = vmatpush1.msra.mxu0 0.0
        %951 = vmatprep.subr.mxu0 0.0
        %952 = vmatpush1.msra.mxu0 0.0
        %953 = vmatprep.subr.mxu0 0.0
        %954 = vmatpush1.msra.mxu0 0.0
        %955 = vmatprep.subr.mxu0 0.0
        %956 = vmatpush1.msra.mxu0 0.0
        %957 = vmatprep.subr.mxu0 0.0
        %958 = vmatpush1.msra.mxu0 0.0
        %959 = vmatprep.subr.mxu0 0.0
        %960 = vmatpush1.msra.mxu0 0.0
        %961 = vmatprep.subr.mxu0 0.0
        %962 = vmatpush1.msra.mxu0 0.0
        %963 = vmatprep.subr.mxu0 0.0
        %964 = vmatpush1.msra.mxu0 0.0
        %965 = vmatprep.subr.mxu0 0.0
        %966 = vmatpush1.msra.mxu0 0.0
        %967 = vmatprep.subr.mxu0 0.0
        %968 = vmatpush1.msra.mxu0 0.0
        %969 = vmatprep.subr.mxu0 0.0
        %970 = vmatpush1.msra.mxu0 0.0
        %971 = vmatprep.subr.mxu0 0.0
        %972 = vmatpush1.msra.mxu0 0.0
        %973 = vmatprep.subr.mxu0 0.0
        %974 = vmatpush1.msra.mxu0 0.0
        %975 = vmatprep.subr.mxu0 0.0
        %976 = vmatpush1.msra.mxu0 0.0
        %977 = vmatprep.subr.mxu0 0.0
        %978 = vmatpush1.msra.mxu0 0.0
        %979 = vmatprep.subr.mxu0 0.0
        %980 = vmatpush1.msra.mxu0 0.0
        %981 = vmatprep.subr.mxu0 0.0
        %982 = vmatpush1.msra.mxu0 0.0
        %983 = vmatprep.mubr.f32.mxu0 0.0
        %984 = vmatmul.mubr.f32.gmra.mrb[0].mxu0 %v917
        %v985 = vpop.f32.mrb[0].mxu0
        %v986 = vadd.f32 0.0, %v985
        %v987 = vpop.f32.mrb[0].mxu0
        %v988 = vadd.f32 0.0, %v987
        %989 = vdwg.mxu0
        %v990 = vadd.f32 %v986, %v988
        %991 = vadd.xlane.f32.xlu0 %v990
        %v992 = vpop.xlane.xlu0 %991
        %v993 = vmul.f32 %v986, %v986
        %v994 = vmul.f32 %v988, %v988
        %v995 = vadd.f32 %v993, %v994
        %996 = vadd.xlane.f32.xlu0 %v995
        %v997 = vpop.xlane.xlu0 %996
        %v998 = vmul.f32 %v992, 0.00390625
        %v999 = vmul.f32 %v997, 0.00390625
        %v1000 = vmul.f32 %v998, %v998
        %v1001 = vsub.f32 %v999, %v1000
        %v1002 = vmax.f32 %v1001, 0.0
        %v1003 = vld [vmem:[%s5] sm:$0xff]
        %v1004 = vadd.f32 %v1002, 1e-05
        %v1005 = vrsqrt.pop %v1004
        %v1006 = vmul.f32 %v1003, %v1005
        %v1007 = vld [vmem:[%s6] sm:$0xff]
        %v1008 = vmul.f32 %v998, %v1006
        %v1009 = vsub.f32 %v1007, %v1008
        %1011 = vset.pattern.permute.xlu0 0
        %1012 = vperm.xlu0 %1011, %v1006
        %v1013 = vpop.permute.xlu0 %1012
        %v1015 = vmul.f32 %v986, %v1013
        %v1016 = vmul.f32 %v988, %v1013
        %1018 = vset.pattern.permute.xlu0 0
        %1019 = vperm.xlu0 %1018, %v1009
        %v1020 = vpop.permute.xlu0 %1019
        %v1022 = vadd.f32 %v1015, %v1020
        %v1023 = vadd.f32 %v1016, %v1020
        %v1024 = vadd.f32 %v331, %v1022
        %v1025 = vadd.f32 %v332, %v1023
        %1026 = vst [vmem:[%s284] sm:$0xff] %v1024
        %1027 = vst [vmem:[%s284 + $0x8] sm:$0xff] %v1025
        %s1028 = sand.u32 %s182, 1
        %s1029 = scalar_lea.sflag [#allocation5], %s1028
        %s1030 = sand.u32 %s182, 1
        %s1031 = smul.addr %s1030, 16
        %s1032 = scalar_lea.vmem [#allocation6], %s1031
        // Predicated region
        $region53: #{tpu_custom_call.1} parent=47 // pred_check
          %p1033 = pneg %p192
        $region54: #{tpu_custom_call.1} parent=47 // pred_check_branch
          %1035 = sbr.rel (%p1033) target = $region56
        $region55: #{tpu_custom_call.1} parent=47 // pred_region
          %s1037 = ssub.s32 256, 256
          %1038 = vsyncadd %s1029, %s1037
          %s1039 = smul.addr %s22, 2
          %s1040 = smul.addr %s1039, 128
          %s1041 = scalar_lea.hbm %s7, %s1040
          %s1043 = sshll.u32 %s1032, 4
          %s1044 = int_to_ptr.vmem [resolvable:$true] %s1043
          %1046 = dma.vmem_to_hbm [thread:$0]  %s1044, 256, %s1041, %s1029
        $region56: #{tpu_custom_call.1} parent=47 // pred_fallthru
          _
      $region48: #{tpu_custom_call.1} parent=5 // pred_fallthru
        _
      %p1047 = scmp.le.s32.totalorder 2, %s17
      // Predicated region
      $region57: #{tpu_custom_call.1} parent=5 // pred_check
        %p1048 = pneg %p1047
      $region58: #{tpu_custom_call.1} parent=5 // pred_check_branch
        %1050 = sbr.rel (%p1048) target = $region60
      $region59: #{tpu_custom_call.1} parent=5 // pred_region
        %s1051 = ssub.s32 %s17, 2
        // Predicated region
        $region61: #{tpu_custom_call.1} parent=59 // pred_check
          %p1052 = pneg %p198
        $region62: #{tpu_custom_call.1} parent=59 // pred_check_branch
          %1054 = sbr.rel (%p1052) target = $region64
        $region63: #{tpu_custom_call.1} parent=59 // pred_region
          %s1055 = sand.u32 %s183, 1
          %s1056 = scalar_lea.sflag [#allocation5], %s1055
          %s1057 = sand.u32 %s183, 1
          %s1058 = smul.addr %s1057, 16
          %s1059 = scalar_lea.vmem [#allocation6], %s1058
          %1060 = dma.done %s1056, 256
        $region64: #{tpu_custom_call.1} parent=59 // pred_fallthru
          _
      $region60: #{tpu_custom_call.1} parent=5 // pred_fallthru
        _
    $region6: #{tpu_custom_call.1} parent=1 // loop_footer
      %s21 = sadd.s32 1, %s17
    $region7: #{tpu_custom_call.1} parent=1 // loop_footer_branch
      %16 = sbr.rel target = $region3
    $region8: #{tpu_custom_call.1} parent=1 // loop_exit
      _
    %1061 = vsyncpa [#allocation4], 1
    %s1062 = scalar_lea.sflag [#allocation4], 1
    %1063 = vsyncpa %s1062, 1
    %1064 = vsyncpa [#allocation5], 1
    %s1065 = scalar_lea.sflag [#allocation5], 1
    %1066 = vsyncpa %s1065, 1

</llo_original>
